<compile_context>
chip_gen: v7x
topology: tpu7x:2x2x1
jax: 0.10.0
libtpu: 0.0.40
codegen_flags: <defaults>
</compile_context>

<pallas_src>
import math

import jax
import jax.numpy as jnp
from jax import lax
from jax.experimental import pallas as pl
from jax.experimental.pallas import tpu as pltpu

_HALF_LOG_2PI = 0.5 * math.log(2.0 * math.pi)
_LANES = 128
_MAX_TILE_ROWS = 1024  # 512 KiB f32 per input buffer; 2x buffers + acc ~ 1.5 MiB VMEM


def _make_nll_kernel(n_total, tile_rows, n_full_tiles):
    """Builds a kernel closed over the static sizes.

    scalars_ref: SMEM (3,) f32 = [mu, 0.5*exp(-logvar), n*(0.5*logvar + 0.5*log(2pi))]
    y_ref:       VMEM (tile_rows, 128) tile of the flattened (padded) input
    out_ref:     SMEM (1, 1) f32 scalar output (the NLL)
    acc_ref:     VMEM (tile_rows, 128) f32 running accumulator of (y - mu)^2
    """

    def kernel(scalars_ref, y_ref, out_ref, acc_ref):
        i = pl.program_id(0)

        @pl.when(i == 0)
        def _init():
            acc_ref[...] = jnp.zeros_like(acc_ref)

        mu = scalars_ref[0]
        y = y_ref[...].astype(jnp.float32)
        d = y - mu
        sq = d * d

        # Tiles fully inside the valid range: plain elementwise accumulate (VPU only).
        @pl.when(i < n_full_tiles)
        def _full():
            acc_ref[...] += sq

        # Tiles that may contain zero-padding: mask by global element index.
        @pl.when(i >= n_full_tiles)
        def _tail():
            row = lax.broadcasted_iota(jnp.int32, sq.shape, 0)
            lane = lax.broadcasted_iota(jnp.int32, sq.shape, 1)
            gidx = (i * tile_rows + row) * _LANES + lane
            acc_ref[...] += jnp.where(gidx < n_total, sq, 0.0)

        @pl.when(i == pl.num_programs(0) - 1)
        def _finalize():
            sse = jnp.sum(acc_ref[...])
            # nll = 0.5*exp(-logvar)*sse + n*(0.5*logvar + 0.5*log(2*pi))
            out_ref[0, 0] = scalars_ref[1] * sse + scalars_ref[2]

    return kernel


def gaussian_nll(params, y):
    """params: (2,) = [mu, logvar]; y: any shape/dtype. Returns scalar f32 NLL."""
    mu = params[0].astype(jnp.float32)
    logvar = params[1].astype(jnp.float32)

    y_flat = jnp.ravel(y)  # keep original dtype; cast per-tile inside the kernel
    n = y_flat.size

    rows = -(-n // _LANES)
    rows8 = -(-rows // 8) * 8
    tile_rows = min(_MAX_TILE_ROWS, rows8)
    rows_padded = -(-rows8 // tile_rows) * tile_rows
    n_padded = rows_padded * _LANES
    if n_padded != n:
        y_flat = jnp.pad(y_flat, (0, n_padded - n))
    y2d = y_flat.reshape(rows_padded, _LANES)

    n_tiles = rows_padded // tile_rows
    n_full_tiles = n // (tile_rows * _LANES)  # tiles containing no padding

    # Scalar precomputation (O(1), done once outside the streaming loop).
    half_inv_var = 0.5 * jnp.exp(-logvar)
    const_term = jnp.float32(n) * (0.5 * logvar + _HALF_LOG_2PI)
    scalars = jnp.stack([mu, half_inv_var, const_term]).astype(jnp.float32)

    kernel = _make_nll_kernel(n, tile_rows, n_full_tiles)

    out = pl.pallas_call(
        kernel,
        out_shape=jax.ShapeDtypeStruct((1, 1), jnp.float32),
        grid_spec=pltpu.PrefetchScalarGridSpec(
            num_scalar_prefetch=0,
            grid=(n_tiles,),
            in_specs=[
                pl.BlockSpec(memory_space=pltpu.SMEM),                # scalars
                pl.BlockSpec((tile_rows, _LANES), lambda i: (i, 0)),  # y tiles
            ],
            out_specs=pl.BlockSpec(memory_space=pltpu.SMEM),
            scratch_shapes=[pltpu.VMEM((tile_rows, _LANES), jnp.float32)],
        ),
        compiler_params=pltpu.CompilerParams(
            dimension_semantics=("arbitrary",),
        ),
    )(scalars, y2d)
    return out.reshape(())


if __name__ == "__main__":
    def ref_nll(params, y):
        mu, logvar = params[0], params[1]
        sd = jnp.exp(0.5 * logvar)
        lp = -0.5 * ((y - mu) / sd) ** 2 - jnp.log(sd) - _HALF_LOG_2PI
        return -jnp.sum(lp)

    # 1) Module-default init (torch.zeros(2)) with the spec-implied small input.
    params0 = jnp.zeros((2,), dtype=jnp.float32)
    y0 = jax.random.normal(jax.random.PRNGKey(0), (2, 4, 16, 16), dtype=jnp.float32)
    out0 = gaussian_nll(params0, y0)
    jax.block_until_ready(out0)
    assert jnp.allclose(out0, ref_nll(params0, y0), rtol=1e-5, atol=1e-4), (out0, ref_nll(params0, y0))

    # 2) Non-aligned shape + nonzero params (exercises in-kernel tail masking).
    params1 = jnp.array([0.3, -0.4], dtype=jnp.float32)
    y1 = jax.random.normal(jax.random.PRNGKey(1), (3, 5, 7), dtype=jnp.float32)
    out1 = gaussian_nll(params1, y1)
    jax.block_until_ready(out1)
    assert jnp.allclose(out1, ref_nll(params1, y1), rtol=1e-5, atol=1e-4), (out1, ref_nll(params1, y1))

    # 3) Multi-tile input (exercises accumulation across grid steps).
    y2 = jax.random.normal(jax.random.PRNGKey(2), (8, 4, 64, 128), dtype=jnp.float32)
    out2 = gaussian_nll(params1, y2)
    jax.block_until_ready(out2)
    assert jnp.allclose(out2, ref_nll(params1, y2), rtol=1e-5, atol=1e-2), (out2, ref_nll(params1, y2))

    print("KERNEL_OK")
</pallas_src>

<mosaic_0001>
module attributes {stable_mosaic.version = 11 : i64} {
  func.func @kernel(%arg0: i32, %arg1: memref<3xf32, #tpu.memory_space<smem>>, %arg2: memref<16x128xf32, #tpu.memory_space<vmem>>, %arg3: memref<1x1xf32, #tpu.memory_space<smem>>, %arg4: memref<16x128xf32, #tpu.memory_space<vmem>>) attributes {dimension_semantics = [#tpu.dimension_semantics<arbitrary>], iteration_bounds = array<i64: 1>, scalar_prefetch = 0 : i64, scratch_operands = 1 : i64, tpu.core_type = #tpu.core_type<tc>, window_params = [{transform_indices = @transform_0, window_bounds = array<i64: 3>}, {transform_indices = @transform_1, window_bounds = array<i64: 16, 128>}, {transform_indices = @transform_2, window_bounds = array<i64: 1, 1>}]} {
    %c0_i32 = arith.constant 0 : i32
    %0 = arith.cmpi eq, %arg0, %c0_i32 : i32
    %1 = arith.extui %0 : i1 to i32
    %c0_i32_0 = arith.constant 0 : i32
    %2 = arith.cmpi ne, %1, %c0_i32_0 : i32
    scf.if %2 {
      %cst = arith.constant 0.000000e+00 : f32
      %17 = vector.broadcast %cst : f32 to vector<16x128xf32>
      %c0_8 = arith.constant 0 : index
      %c0_9 = arith.constant 0 : index
      %18 = vector.load %arg4[%c0_8, %c0_9] : memref<16x128xf32, #tpu.memory_space<vmem>>, vector<16x128xf32>
      tpu.vector_store %arg4[%c0_8, %c0_9], %17 {strides = array<i32>} : memref<16x128xf32, #tpu.memory_space<vmem>>, vector<16x128xf32>,
    } else {
    }
    %c0 = arith.constant 0 : index
    %3 = memref.load %arg1[%c0] : memref<3xf32, #tpu.memory_space<smem>>
    %c0_1 = arith.constant 0 : index
    %c0_2 = arith.constant 0 : index
    %4 = vector.load %arg2[%c0_1, %c0_2] : memref<16x128xf32, #tpu.memory_space<vmem>>, vector<16x128xf32>
    %5 = vector.broadcast %3 : f32 to vector<16x128xf32>
    %6 = arith.subf %4, %5 : vector<16x128xf32>
    %7 = arith.mulf %6, %6 : vector<16x128xf32>
    %c1_i32 = arith.constant 1 : i32
    %8 = arith.cmpi slt, %arg0, %c1_i32 : i32
    %9 = arith.extui %8 : i1 to i32
    %c0_i32_3 = arith.constant 0 : i32
    %10 = arith.cmpi ne, %9, %c0_i32_3 : i32
    scf.if %10 {
      %c0_8 = arith.constant 0 : index
      %c0_9 = arith.constant 0 : index
      %17 = vector.load %arg4[%c0_8, %c0_9] : memref<16x128xf32, #tpu.memory_space<vmem>>, vector<16x128xf32>
      %18 = arith.addf %17, %7 : vector<16x128xf32>
      %c0_10 = arith.constant 0 : index
      %c0_11 = arith.constant 0 : index
      %19 = vector.load %arg4[%c0_10, %c0_11] : memref<16x128xf32, #tpu.memory_space<vmem>>, vector<16x128xf32>
      tpu.vector_store %arg4[%c0_10, %c0_11], %18 {strides = array<i32>} : memref<16x128xf32, #tpu.memory_space<vmem>>, vector<16x128xf32>,
    } else {
    }
    %c1_i32_4 = arith.constant 1 : i32
    %11 = arith.cmpi sge, %arg0, %c1_i32_4 : i32
    %12 = arith.extui %11 : i1 to i32
    %c0_i32_5 = arith.constant 0 : i32
    %13 = arith.cmpi ne, %12, %c0_i32_5 : i32
    scf.if %13 {
      %17 = tpu.iota {dimensions = array<i32: 0>} : vector<16x128xi32>
      %18 = tpu.iota {dimensions = array<i32: 1>} : vector<16x128xi32>
      %c16_i32 = arith.constant 16 : i32
      %19 = arith.muli %arg0, %c16_i32 : i32
      %20 = vector.broadcast %19 : i32 to vector<16x128xi32>
      %21 = arith.addi %20, %17 : vector<16x128xi32>
      %c128_i32 = arith.constant 128 : i32
      %22 = vector.broadcast %c128_i32 : i32 to vector<16x128xi32>
      %23 = arith.muli %21, %22 : vector<16x128xi32>
      %24 = arith.addi %23, %18 : vector<16x128xi32>
      %c0_8 = arith.constant 0 : index
      %c0_9 = arith.constant 0 : index
      %25 = vector.load %arg4[%c0_8, %c0_9] : memref<16x128xf32, #tpu.memory_space<vmem>>, vector<16x128xf32>
      %c2048_i32 = arith.constant 2048 : i32
      %26 = vector.broadcast %c2048_i32 : i32 to vector<16x128xi32>
      %27 = arith.cmpi slt, %24, %26 : vector<16x128xi32>
      %cst = arith.constant 0.000000e+00 : f32
      %28 = vector.broadcast %cst : f32 to vector<16x128xf32>
      %29 = arith.select %27, %7, %28 : vector<16x128xi1>, vector<16x128xf32>
      %30 = arith.addf %25, %29 : vector<16x128xf32>
      %c0_10 = arith.constant 0 : index
      %c0_11 = arith.constant 0 : index
      %31 = vector.load %arg4[%c0_10, %c0_11] : memref<16x128xf32, #tpu.memory_space<vmem>>, vector<16x128xf32>
      tpu.vector_store %arg4[%c0_10, %c0_11], %30 {strides = array<i32>} : memref<16x128xf32, #tpu.memory_space<vmem>>, vector<16x128xf32>,
    } else {
    }
    %c0_i32_6 = arith.constant 0 : i32
    %14 = arith.cmpi eq, %arg0, %c0_i32_6 : i32
    %15 = arith.extui %14 : i1 to i32
    %c0_i32_7 = arith.constant 0 : i32
    %16 = arith.cmpi ne, %15, %c0_i32_7 : i32
    scf.if %16 {
      %c0_8 = arith.constant 0 : index
      %c0_9 = arith.constant 0 : index
      %17 = vector.load %arg4[%c0_8, %c0_9] : memref<16x128xf32, #tpu.memory_space<vmem>>, vector<16x128xf32>
      %18 = vector.shape_cast %17 : vector<16x128xf32> to vector<1x16x128xf32>
      %cst = arith.constant dense<0.000000e+00> : vector<1xf32>
      %19 = vector.multi_reduction <add>, %18, %cst [1, 2] : vector<1x16x128xf32> to vector<1xf32>
      %20 = vector.shape_cast %19 : vector<1xf32> to vector<1x1x1xf32>
      %21 = vector.extract %20[0, 0, 0] : f32 from vector<1x1x1xf32>
      %c1 = arith.constant 1 : index
      %22 = memref.load %arg1[%c1] : memref<3xf32, #tpu.memory_space<smem>>
      %23 = arith.mulf %22, %21 : f32
      %c2 = arith.constant 2 : index
      %24 = memref.load %arg1[%c2] : memref<3xf32, #tpu.memory_space<smem>>
      %25 = arith.addf %23, %24 : f32
      %c0_10 = arith.constant 0 : index
      %c0_11 = arith.constant 0 : index
      %26 = memref.load %arg3[%c0_10, %c0_11] : memref<1x1xf32, #tpu.memory_space<smem>>
      memref.store %25, %arg3[%c0_10, %c0_11] : memref<1x1xf32, #tpu.memory_space<smem>>
    } else {
    }
    return
  }
  func.func @transform_0(%arg0: i32) -> i32 {
    %c0_i32 = arith.constant 0 : i32
    %c0_i32_0 = arith.constant 0 : i32
    return %c0_i32 : i32
  }
  func.func @transform_1(%arg0: i32) -> (i32, i32) {
    %c0_i32 = arith.constant 0 : i32
    %c0_i32_0 = arith.constant 0 : i32
    return %arg0, %c0_i32 : i32, i32
  }
  func.func @transform_2(%arg0: i32) -> (i32, i32) {
    %c0_i32 = arith.constant 0 : i32
    %c0_i32_0 = arith.constant 0 : i32
    %c0_i32_1 = arith.constant 0 : i32
    return %c0_i32, %c0_i32_0 : i32, i32
  }
}

</mosaic_0001>

<llo_original>
// kernel: tpu_custom_call.1
$region0: #{tpu_custom_call.1}
  #allocation0 [shape = 'u32[]', space=smem, size = 0x4, offset = 0x4, fixed_abs, tag = 'smem constant byte address 0x4 - core index']
  #allocation1 [shape = 'u32[144,128]{1,0:T(1,128)}', space=vmem, size = 0x12000, scoped, tag = 'internal scratch']
  #allocation2 [shape = 'f32[16,128]{1,0:T(8,128)}', space=vmem, size = 0x2000, scoped, tag = 'scratch operand']
  %s0 = inlined_call_operand.hbm [shape: f32[3], index: 0, kind: input, shape index: {}]
  %s1 = inlined_call_operand.hbm [shape: f32[16,128], index: 1, kind: input, shape index: {}]
  %s2 = inlined_call_operand.hbm [shape: f32[1,1], index: 2, kind: output, shape index: {}]
  %s3 = sld [smem:[#allocation0]]
  $region42: #{tpu_custom_call.1} parent=0
    _
  %s5 = ssub.s32 1, %s3
  %s6 = scalar_select 0, %s5, %s3
  $region1: #{tpu_custom_call.1} parent=0
    #allocation3 [shape = 'u8[512]{0}', space=smem, size = 0x200, scoped, tag = 'input window, operand 0, single buffered']
    #allocation4 [shape = 's32[1]{0}', space=sflag, size = 0x4, scoped, tag = 'scoped memory for tpu_custom_call.1']
    #allocation5 [shape = 's32[1]{0}', space=sflag, size = 0x4, scoped, tag = 'scoped memory for tpu_custom_call.1']
    #allocation6 [shape = 's32[1]{0}', space=sflag, size = 0x4, scoped, tag = 'scoped memory for tpu_custom_call.1']
    #allocation7 [shape = 'u8[8192]{0}', space=vmem, size = 0x2000, scoped, tag = 'input window, operand 1, single buffered']
    #allocation8 [shape = 'u8[512]{0}', space=smem, size = 0x200, scoped, tag = 'output window, operand 0, single buffered']
    %7 = vsyncpa [#allocation5], 0
    %8 = vsyncpa [#allocation4], 0
    %9 = vsyncpa [#allocation6], 0
    // Predicated region
    $region2: #{tpu_custom_call.1} parent=1 // pred_check
      _
    $region3: #{tpu_custom_call.1} parent=1 // pred_check_branch
      %11 = sbr.rel (0) target = $region5
    $region4: #{tpu_custom_call.1} parent=1 // pred_region
      %s13 = ssub.s32 16, 16
      %14 = vsyncadd [#allocation5], %s13
      %17 = dma.hbm_to_smem %s0, 16, [#allocation3], [#allocation5]
    $region5: #{tpu_custom_call.1} parent=1 // pred_fallthru
      _
    // Predicated region
    $region6: #{tpu_custom_call.1} parent=1 // pred_check
      _
    $region7: #{tpu_custom_call.1} parent=1 // pred_check_branch
      %19 = sbr.rel (0) target = $region9
    $region8: #{tpu_custom_call.1} parent=1 // pred_region
      %s21 = ssub.s32 256, 256
      %22 = vsyncadd [#allocation4], %s21
      %s23 = sshll.u32 [#allocation7], 4
      %s24 = int_to_ptr.vmem [resolvable:$true] %s23
      %29 = dma.hbm_to_vmem [thread:$0]  %s1, 256, %s24, [#allocation4], 128, 128, 8
    $region9: #{tpu_custom_call.1} parent=1 // pred_fallthru
      _
    // Predicated region
    $region10: #{tpu_custom_call.1} parent=1 // pred_check
      _
    $region11: #{tpu_custom_call.1} parent=1 // pred_check_branch
      %31 = sbr.rel (0) target = $region13
    $region12: #{tpu_custom_call.1} parent=1 // pred_region
      %32 = dma.done [#allocation5], 16
    $region13: #{tpu_custom_call.1} parent=1 // pred_fallthru
      _
    // Predicated region
    $region14: #{tpu_custom_call.1} parent=1 // pred_check
      _
    $region15: #{tpu_custom_call.1} parent=1 // pred_check_branch
      %34 = sbr.rel (0) target = $region17
    $region16: #{tpu_custom_call.1} parent=1 // pred_region
      %35 = dma.done [#allocation4], 256
    $region17: #{tpu_custom_call.1} parent=1 // pred_fallthru
      _
    %36 = sfence
    %p37 = scmp.eq.s32.totalorder 0, 0
    // Predicated region
    $region18: #{tpu_custom_call.1} parent=1 // pred_check
      %p38 = pneg %p37
    $region19: #{tpu_custom_call.1} parent=1 // pred_check_branch
      %40 = sbr.rel (%p38) target = $region21
    $region20: #{tpu_custom_call.1} parent=1 // pred_region
      %41 = vst [vmem:[#allocation2] sm:$0xff] 0.0
      %42 = vst [vmem:[#allocation2 + $0x8] sm:$0xff] 0.0
    $region21: #{tpu_custom_call.1} parent=1 // pred_fallthru
      _
    %s43 = sld [smem:[#allocation3]]
    %v44 = vld [vmem:[#allocation7] sm:$0xff]
    %v45 = vld [vmem:[#allocation7 + $0x8] sm:$0xff]
    %v46 = vstv %s43
    %v47 = vsub.f32 %v44, %v46
    %v48 = vsub.f32 %v45, %v46
    %v49 = vmul.f32 %v47, %v47
    %v50 = vmul.f32 %v48, %v48
    %p51 = scmp.lt.s32.totalorder 0, 1
    // Predicated region
    $region22: #{tpu_custom_call.1} parent=1 // pred_check
      %p52 = pneg %p51
    $region23: #{tpu_custom_call.1} parent=1 // pred_check_branch
      %54 = sbr.rel (%p52) target = $region25
    $region24: #{tpu_custom_call.1} parent=1 // pred_region
      %v55 = vld [vmem:[#allocation2] sm:$0xff]
      %v56 = vld [vmem:[#allocation2 + $0x8] sm:$0xff]
      %v57 = vadd.f32 %v55, %v49
      %v58 = vadd.f32 %v56, %v50
      %59 = vst [vmem:[#allocation2] sm:$0xff] %v57
      %60 = vst [vmem:[#allocation2 + $0x8] sm:$0xff] %v58
    $region25: #{tpu_custom_call.1} parent=1 // pred_fallthru
      _
    %p61 = scmp.ge.s32.totalorder 0, 1
    // Predicated region
    $region26: #{tpu_custom_call.1} parent=1 // pred_check
      %p62 = pneg %p61
    $region27: #{tpu_custom_call.1} parent=1 // pred_check_branch
      %64 = sbr.rel (%p62) target = $region29
    $region28: #{tpu_custom_call.1} parent=1 // pred_region
      %v65 = vlaneseq
      %v66 = vshrl.u32 %v65, 7
      %v67 = vadd.s32 %v66, 8
      %v68 = vlaneseq
      %v69 = vand.u32 %v68, 127
      %s70 = smul.u32 0, 16
      %v71 = vstv %s70
      %v72 = vadd.s32 %v71, %v66
      %v73 = vadd.s32 %v71, %v67
      %v74 = vmul.u32 %v72, 128
      %v75 = vmul.u32 %v73, 128
      %v76 = vadd.s32 %v74, %v69
      %v77 = vadd.s32 %v75, %v69
      %v78 = vld [vmem:[#allocation2] sm:$0xff]
      %v79 = vld [vmem:[#allocation2 + $0x8] sm:$0xff]
      %vm80 = vcmp.lt.s32.totalorder %v76, 2048
      %vm81 = vcmp.lt.s32.totalorder %v77, 2048
      %v82 = vsel %vm80, %v49, 0.0
      %v83 = vsel %vm81, %v50, 0.0
      %v84 = vadd.f32 %v78, %v82
      %v85 = vadd.f32 %v79, %v83
      %86 = vst [vmem:[#allocation2] sm:$0xff] %v84
      %87 = vst [vmem:[#allocation2 + $0x8] sm:$0xff] %v85
    $region29: #{tpu_custom_call.1} parent=1 // pred_fallthru
      _
    // Predicated region
    $region30: #{tpu_custom_call.1} parent=1 // pred_check
      %p88 = pneg %p37
    $region31: #{tpu_custom_call.1} parent=1 // pred_check_branch
      %90 = sbr.rel (%p88) target = $region33
    $region32: #{tpu_custom_call.1} parent=1 // pred_region
      %v91 = vld [vmem:[#allocation2] sm:$0xff]
      %v92 = vld [vmem:[#allocation2 + $0x8] sm:$0xff]
      %v93 = vadd.f32 %v91, %v92
      %94 = vadd.xlane.f32.xlu0 %v93
      %v95 = vpop.xlane.xlu0 %94
      %v96 = vrot.slane %v95, 4
      %v97 = vadd.f32 %v95, %v96
      %v98 = vrot.slane %v97, 2
      %v99 = vadd.f32 %v97, %v98
      %v100 = vrot.slane %v99, 1
      %v101 = vadd.f32 %v99, %v100
      %s102 = vtos %v101
      %s103 = sld [smem:[#allocation3 + $0x1]]
      %s104 = smul.f32 %s103, %s102
      %s105 = sld [smem:[#allocation3 + $0x2]]
      %s106 = sadd.f32 %s104, %s105
      %s107 = scalar_lea.smem [#allocation8], 0
      %108 = sst [smem:[%s107]] %s106
    $region33: #{tpu_custom_call.1} parent=1 // pred_fallthru
      _
    // Predicated region
    $region34: #{tpu_custom_call.1} parent=1 // pred_check
      _
    $region35: #{tpu_custom_call.1} parent=1 // pred_check_branch
      %110 = sbr.rel (0) target = $region37
    $region36: #{tpu_custom_call.1} parent=1 // pred_region
      %s112 = ssub.s32 16, 16
      %113 = vsyncadd [#allocation6], %s112
      %116 = dma.smem_to_hbm [#allocation8], 16, %s2, [#allocation6]
    $region37: #{tpu_custom_call.1} parent=1 // pred_fallthru
      _
    // Predicated region
    $region38: #{tpu_custom_call.1} parent=1 // pred_check
      _
    $region39: #{tpu_custom_call.1} parent=1 // pred_check_branch
      %118 = sbr.rel (0) target = $region41
    $region40: #{tpu_custom_call.1} parent=1 // pred_region
      %119 = dma.done [#allocation6], 16
    $region41: #{tpu_custom_call.1} parent=1 // pred_fallthru
      _
    %120 = sfence
    %121 = vsyncpa [#allocation4], 1
    %122 = vsyncpa [#allocation5], 1
    %123 = vsyncpa [#allocation6], 1

</llo_original>
